<compile_context>
chip_gen: v5e
topology: v5e:2x2
jax: 0.10.0
libtpu: 0.0.40
codegen_flags: <defaults>
</compile_context>

<pallas_src>
import numpy as np
import jax
import jax.numpy as jnp
from jax.experimental import pallas as pl
from jax.experimental.pallas import tpu as pltpu


# ---------------------------------------------------------------------------
# Parameter construction (glue, plain numpy — mirrors the PyTorch module)
# ---------------------------------------------------------------------------
def angle_axis_to_rot_mat(angle, axis_vec):
    """Rodrigues rotation matrix, identical math to the reference."""
    axis_vec = np.asarray(axis_vec, dtype=np.float64)
    norm = np.linalg.norm(axis_vec)
    if norm <= 0:
        raise ValueError("The given axis_vec is a zero vector.")
    u = axis_vec / norm
    u_x, u_y, u_z = u
    cos_val = np.cos(angle)
    sin_val = np.sin(angle)
    u_cross = np.array([[0.0, -u_z, u_y],
                        [u_z, 0.0, -u_x],
                        [-u_y, u_x, 0.0]])
    u_outer = np.array([[u_x * u_x, u_x * u_y, u_x * u_z],
                        [u_x * u_y, u_y * u_y, u_y * u_z],
                        [u_x * u_z, u_y * u_z, u_z * u_z]])
    I = np.eye(3)
    R = cos_val * I + sin_val * u_cross + (1.0 - cos_val) * u_outer
    return R.astype(np.float32)


def random_rotation_params(angle_range, axis_vec=None, seed=0):
    """Deterministic replacement for RandomRotation.get_params (fixed seed)."""
    if isinstance(angle_range, float):
        if angle_range < 0.0:
            raise ValueError("angle_range must be positive if a single float.")
        angle_range = [-angle_range, angle_range]
    rng = np.random.RandomState(seed)
    angle = float(rng.uniform(low=angle_range[0], high=angle_range[1]))
    if axis_vec is None:
        axis_vec = rng.uniform(low=0.0, high=1.0, size=3)
    return angle, np.asarray(axis_vec, dtype=np.float64)


# ---------------------------------------------------------------------------
# Pallas kernel: out = R @ pc as 9 per-lane FMAs.
#   r_ref : (9,)  f32 in SMEM  (row-major 3x3 rotation matrix)
#   pc_ref: (3, TILE_N) f32 in VMEM
#   o_ref : (3, TILE_N) f32 in VMEM
# ---------------------------------------------------------------------------
def _rotate_kernel(r_ref, pc_ref, o_ref):
    x = pc_ref[0, :]
    y = pc_ref[1, :]
    z = pc_ref[2, :]
    o_ref[0, :] = (r_ref[0] * x + r_ref[1] * y + r_ref[2] * z).astype(o_ref.dtype)
    o_ref[1, :] = (r_ref[3] * x + r_ref[4] * y + r_ref[5] * z).astype(o_ref.dtype)
    o_ref[2, :] = (r_ref[6] * x + r_ref[7] * y + r_ref[8] * z).astype(o_ref.dtype)


def rotate_pc_pallas(pc, R, *, tile_n=8192):
    """
    pc : jnp.ndarray of shape (3, N), float32
    R  : jnp.ndarray of shape (3, 3), float32
    Returns R @ pc computed with a Pallas TPU kernel, tiled over N.
    """
    F, N = pc.shape
    assert F == 3, "point-cloud must have 3 features (x, y, z)"

    # Shrink the lane tile for small clouds; keep it a multiple of 128 lanes.
    tile_n = int(min(tile_n, max(128, ((N + 127) // 128) * 128)))
    grid = (pl.cdiv(N, tile_n),)

    r_flat = jnp.asarray(R, dtype=jnp.float32).reshape(9)

    return pl.pallas_call(
        _rotate_kernel,
        out_shape=jax.ShapeDtypeStruct((3, N), pc.dtype),
        grid=grid,
        in_specs=[
            # 9 rotation scalars, whole array in SMEM (no VMEM tile wasted).
            pl.BlockSpec(memory_space=pltpu.MemorySpace.SMEM),
            # Point-cloud lane tile; partial last block is masked by Pallas.
            pl.BlockSpec((3, tile_n), lambda i: (0, i)),
        ],
        out_specs=pl.BlockSpec((3, tile_n), lambda i: (0, i)),
        compiler_params=pltpu.CompilerParams(
            dimension_semantics=("parallel",)),
    )(r_flat, pc)


# ---------------------------------------------------------------------------
# Module-equivalent wrapper
# ---------------------------------------------------------------------------
def random_rotation_forward(pc, angle_range, axis_vec=None, seed=0):
    # TODO(synk): the module samples angle/axis with np.random at forward time;
    # here the sampling stays host-side numpy with a fixed seed for determinism.
    angle, axis = random_rotation_params(angle_range, axis_vec, seed=seed)
    if angle == 0.0:
        return pc
    R = jnp.asarray(angle_axis_to_rot_mat(angle, axis))
    return rotate_pc_pallas(pc, R)


if __name__ == "__main__":
    key = jax.random.PRNGKey(0)
    num_points = 256
    pc = jax.random.normal(key, (3, num_points), dtype=jnp.float32)

    out = random_rotation_forward(pc, angle_range=float(np.pi) / 2.0,
                                  axis_vec=None, seed=0)
    out = jax.block_until_ready(out)

    # Correctness check against plain-JAX reference.
    angle, axis = random_rotation_params(float(np.pi) / 2.0, None, seed=0)
    R = jnp.asarray(angle_axis_to_rot_mat(angle, axis))
    ref = R @ pc
    np.testing.assert_allclose(np.asarray(out), np.asarray(ref),
                               rtol=1e-5, atol=1e-5)
    assert out.shape == (3, num_points)

    # Secondary check: multi-step grid + partial (masked) last block,
    # exercised without any wrapper pad/slice.
    pc2 = jax.random.normal(jax.random.PRNGKey(1), (3, 3000), dtype=jnp.float32)
    out2 = jax.block_until_ready(rotate_pc_pallas(pc2, R, tile_n=1024))
    np.testing.assert_allclose(np.asarray(out2), np.asarray(R @ pc2),
                               rtol=1e-5, atol=1e-5)

    print("KERNEL_OK")
</pallas_src>

<mosaic_0001>
module attributes {stable_mosaic.version = 11 : i64} {
  func.func @_rotate_kernel(%arg0: i32, %arg1: memref<9xf32, #tpu.memory_space<smem>>, %arg2: memref<3x256xf32, #tpu.memory_space<vmem>>, %arg3: memref<3x256xf32, #tpu.memory_space<vmem>>) attributes {dimension_semantics = [#tpu.dimension_semantics<parallel>], iteration_bounds = array<i64: 1>, scalar_prefetch = 0 : i64, scratch_operands = 0 : i64, tpu.core_type = #tpu.core_type<tc>, window_params = [{transform_indices = @transform_0, window_bounds = array<i64: 9>}, {transform_indices = @transform_1, window_bounds = array<i64: 3, 256>}, {transform_indices = @transform_2, window_bounds = array<i64: 3, 256>}]} {
    %c0 = arith.constant 0 : index
    %c0_0 = arith.constant 0 : index
    %0 = vector.load %arg2[%c0, %c0_0] : memref<3x256xf32, #tpu.memory_space<vmem>>, vector<1x256xf32>
    %1 = vector.shape_cast %0 : vector<1x256xf32> to vector<256xf32>
    %c1 = arith.constant 1 : index
    %c0_1 = arith.constant 0 : index
    %2 = vector.load %arg2[%c1, %c0_1] : memref<3x256xf32, #tpu.memory_space<vmem>>, vector<1x256xf32>
    %3 = vector.shape_cast %2 : vector<1x256xf32> to vector<256xf32>
    %c2 = arith.constant 2 : index
    %c0_2 = arith.constant 0 : index
    %4 = vector.load %arg2[%c2, %c0_2] : memref<3x256xf32, #tpu.memory_space<vmem>>, vector<1x256xf32>
    %5 = vector.shape_cast %4 : vector<1x256xf32> to vector<256xf32>
    %c0_3 = arith.constant 0 : index
    %6 = memref.load %arg1[%c0_3] : memref<9xf32, #tpu.memory_space<smem>>
    %7 = vector.broadcast %6 : f32 to vector<256xf32>
    %8 = arith.mulf %7, %1 : vector<256xf32>
    %c1_4 = arith.constant 1 : index
    %9 = memref.load %arg1[%c1_4] : memref<9xf32, #tpu.memory_space<smem>>
    %10 = vector.broadcast %9 : f32 to vector<256xf32>
    %11 = arith.mulf %10, %3 : vector<256xf32>
    %12 = arith.addf %8, %11 : vector<256xf32>
    %c2_5 = arith.constant 2 : index
    %13 = memref.load %arg1[%c2_5] : memref<9xf32, #tpu.memory_space<smem>>
    %14 = vector.broadcast %13 : f32 to vector<256xf32>
    %15 = arith.mulf %14, %5 : vector<256xf32>
    %16 = arith.addf %12, %15 : vector<256xf32>
    %c0_6 = arith.constant 0 : index
    %c0_7 = arith.constant 0 : index
    %17 = vector.load %arg3[%c0_6, %c0_7] : memref<3x256xf32, #tpu.memory_space<vmem>>, vector<1x256xf32>
    %18 = vector.shape_cast %17 : vector<1x256xf32> to vector<256xf32>
    %19 = vector.shape_cast %16 : vector<256xf32> to vector<1x256xf32>
    tpu.vector_store %arg3[%c0_6, %c0_7], %19 {strides = array<i32>} : memref<3x256xf32, #tpu.memory_space<vmem>>, vector<1x256xf32>,
    %c3 = arith.constant 3 : index
    %20 = memref.load %arg1[%c3] : memref<9xf32, #tpu.memory_space<smem>>
    %21 = vector.broadcast %20 : f32 to vector<256xf32>
    %22 = arith.mulf %21, %1 : vector<256xf32>
    %c4 = arith.constant 4 : index
    %23 = memref.load %arg1[%c4] : memref<9xf32, #tpu.memory_space<smem>>
    %24 = vector.broadcast %23 : f32 to vector<256xf32>
    %25 = arith.mulf %24, %3 : vector<256xf32>
    %26 = arith.addf %22, %25 : vector<256xf32>
    %c5 = arith.constant 5 : index
    %27 = memref.load %arg1[%c5] : memref<9xf32, #tpu.memory_space<smem>>
    %28 = vector.broadcast %27 : f32 to vector<256xf32>
    %29 = arith.mulf %28, %5 : vector<256xf32>
    %30 = arith.addf %26, %29 : vector<256xf32>
    %c1_8 = arith.constant 1 : index
    %c0_9 = arith.constant 0 : index
    %31 = vector.load %arg3[%c1_8, %c0_9] : memref<3x256xf32, #tpu.memory_space<vmem>>, vector<1x256xf32>
    %32 = vector.shape_cast %31 : vector<1x256xf32> to vector<256xf32>
    %33 = vector.shape_cast %30 : vector<256xf32> to vector<1x256xf32>
    tpu.vector_store %arg3[%c1_8, %c0_9], %33 {strides = array<i32>} : memref<3x256xf32, #tpu.memory_space<vmem>>, vector<1x256xf32>,
    %c6 = arith.constant 6 : index
    %34 = memref.load %arg1[%c6] : memref<9xf32, #tpu.memory_space<smem>>
    %35 = vector.broadcast %34 : f32 to vector<256xf32>
    %36 = arith.mulf %35, %1 : vector<256xf32>
    %c7 = arith.constant 7 : index
    %37 = memref.load %arg1[%c7] : memref<9xf32, #tpu.memory_space<smem>>
    %38 = vector.broadcast %37 : f32 to vector<256xf32>
    %39 = arith.mulf %38, %3 : vector<256xf32>
    %40 = arith.addf %36, %39 : vector<256xf32>
    %c8 = arith.constant 8 : index
    %41 = memref.load %arg1[%c8] : memref<9xf32, #tpu.memory_space<smem>>
    %42 = vector.broadcast %41 : f32 to vector<256xf32>
    %43 = arith.mulf %42, %5 : vector<256xf32>
    %44 = arith.addf %40, %43 : vector<256xf32>
    %c2_10 = arith.constant 2 : index
    %c0_11 = arith.constant 0 : index
    %45 = vector.load %arg3[%c2_10, %c0_11] : memref<3x256xf32, #tpu.memory_space<vmem>>, vector<1x256xf32>
    %46 = vector.shape_cast %45 : vector<1x256xf32> to vector<256xf32>
    %47 = vector.shape_cast %44 : vector<256xf32> to vector<1x256xf32>
    tpu.vector_store %arg3[%c2_10, %c0_11], %47 {strides = array<i32>} : memref<3x256xf32, #tpu.memory_space<vmem>>, vector<1x256xf32>,
    return
  }
  func.func @transform_0(%arg0: i32) -> i32 {
    %c0_i32 = arith.constant 0 : i32
    %c0_i32_0 = arith.constant 0 : i32
    return %c0_i32 : i32
  }
  func.func @transform_1(%arg0: i32) -> (i32, i32) {
    %c0_i32 = arith.constant 0 : i32
    %c0_i32_0 = arith.constant 0 : i32
    return %c0_i32, %arg0 : i32, i32
  }
  func.func @transform_2(%arg0: i32) -> (i32, i32) {
    %c0_i32 = arith.constant 0 : i32
    %c0_i32_0 = arith.constant 0 : i32
    return %c0_i32, %arg0 : i32, i32
  }
}

</mosaic_0001>

<llo_original>
// kernel: tpu_custom_call.1
$region0: #{tpu_custom_call.1}
  #allocation0 [shape = 'u32[]', space=smem, size = 0x4, offset = 0x4, fixed_abs, tag = 'smem constant byte address 0x4 - core index']
  #allocation1 [shape = 'u32[72,128]{1,0:T(1,128)}', space=vmem, size = 0x9000, scoped, tag = 'internal scratch']
  %s0 = inlined_call_operand.hbm [shape: f32[9], index: 0, kind: input, shape index: {}]
  %s1 = inlined_call_operand.hbm [shape: f32[3,256], index: 1, kind: input, shape index: {}]
  %s2 = inlined_call_operand.hbm [shape: f32[3,256], index: 2, kind: output, shape index: {}]
  %s3 = sld [smem:[#allocation0]]
  $region26: #{tpu_custom_call.1} parent=0
    _
  %s5 = ssub.s32 1, %s3
  %s6 = scalar_select 0, %s5, %s3
  $region1: #{tpu_custom_call.1} parent=0
    #allocation2 [shape = 'u8[512]{0}', space=smem, size = 0x200, scoped, tag = 'input window, operand 0, single buffered']
    #allocation3 [shape = 's32[1]{0}', space=sflag, size = 0x4, scoped, tag = 'scoped memory for tpu_custom_call.1']
    #allocation4 [shape = 's32[1]{0}', space=sflag, size = 0x4, scoped, tag = 'scoped memory for tpu_custom_call.1']
    #allocation5 [shape = 's32[1]{0}', space=sflag, size = 0x4, scoped, tag = 'scoped memory for tpu_custom_call.1']
    #allocation6 [shape = 'u8[4096]{0}', space=vmem, size = 0x1000, scoped, tag = 'input window, operand 1, single buffered']
    #allocation7 [shape = 'u8[4096]{0}', space=vmem, size = 0x1000, scoped, tag = 'output window, operand 0, single buffered']
    %7 = vsyncpa [#allocation5], 0
    %8 = vsyncpa [#allocation3], 0
    %9 = vsyncpa [#allocation4], 0
    // Predicated region
    $region2: #{tpu_custom_call.1} parent=1 // pred_check
      _
    $region3: #{tpu_custom_call.1} parent=1 // pred_check_branch
      %11 = sbr.rel (0) target = $region5
    $region4: #{tpu_custom_call.1} parent=1 // pred_region
      %13 = vsyncadd [#allocation5], 0
      %s15 = sshll.u32 %s0, 4
      %s16 = int_to_ptr.hbm [resolvable:$true] %s15
      %18 = dma.hbm_to_smem %s16, 16, [#allocation2], [#allocation5]
    $region5: #{tpu_custom_call.1} parent=1 // pred_fallthru
      _
    // Predicated region
    $region6: #{tpu_custom_call.1} parent=1 // pred_check
      _
    $region7: #{tpu_custom_call.1} parent=1 // pred_check_branch
      %20 = sbr.rel (0) target = $region9
    $region8: #{tpu_custom_call.1} parent=1 // pred_region
      %22 = vsyncadd [#allocation3], 0
      %s24 = sshll.u32 %s1, 4
      %s25 = int_to_ptr.hbm [resolvable:$true] %s24
      %s26 = sshll.u32 [#allocation6], 4
      %s27 = int_to_ptr.vmem [resolvable:$true] %s26
      %29 = dma.hbm_to_vmem [thread:$0]  %s25, 128, %s27, [#allocation3]
    $region9: #{tpu_custom_call.1} parent=1 // pred_fallthru
      _
    // Predicated region
    $region10: #{tpu_custom_call.1} parent=1 // pred_check
      _
    $region11: #{tpu_custom_call.1} parent=1 // pred_check_branch
      %31 = sbr.rel (0) target = $region13
    $region12: #{tpu_custom_call.1} parent=1 // pred_region
      %33 = dma.done [#allocation5], 16
    $region13: #{tpu_custom_call.1} parent=1 // pred_fallthru
      _
    // Predicated region
    $region14: #{tpu_custom_call.1} parent=1 // pred_check
      _
    $region15: #{tpu_custom_call.1} parent=1 // pred_check_branch
      %35 = sbr.rel (0) target = $region17
    $region16: #{tpu_custom_call.1} parent=1 // pred_region
      %37 = dma.done [#allocation3], 128
    $region17: #{tpu_custom_call.1} parent=1 // pred_fallthru
      _
    %38 = sfence
    %v39 = vld [vmem:[#allocation6] ss:$4 sm:$0x3]
    %s40 = scalar_lea.vmem [#allocation6], 1
    %v41 = vld [vmem:[%s40] ss:$4 sm:$0x3]
    %s42 = scalar_lea.vmem [#allocation6], 2
    %v43 = vld [vmem:[%s42] ss:$4 sm:$0x3]
    %s44 = sld [smem:[#allocation2]]
    %v45 = vstv %s44
    %v46 = vmul.f32 %v45, %v39
    %s47 = sld [smem:[#allocation2 + $0x1]]
    %v48 = vstv %s47
    %v49 = vmul.f32 %v48, %v41
    %v50 = vadd.f32 %v46, %v49
    %s51 = sld [smem:[#allocation2 + $0x2]]
    %v52 = vstv %s51
    %v53 = vmul.f32 %v52, %v43
    %v54 = vadd.f32 %v50, %v53
    %v55 = vlaneseq
    %vm56 = vcmp.ge.s32.totalorder %v55, 0
    %vm57 = vcmp.lt.s32.totalorder %v55, 256
    %vm58 = vmand %vm56, %vm57
    %59 = vst.msk [vmem:[#allocation7] ss:$4 sm:$0x3] %vm58, %v54
    %s60 = sld [smem:[#allocation2 + $0x3]]
    %v61 = vstv %s60
    %v62 = vmul.f32 %v61, %v39
    %s63 = sld [smem:[#allocation2 + $0x4]]
    %v64 = vstv %s63
    %v65 = vmul.f32 %v64, %v41
    %v66 = vadd.f32 %v62, %v65
    %s67 = sld [smem:[#allocation2 + $0x5]]
    %v68 = vstv %s67
    %v69 = vmul.f32 %v68, %v43
    %v70 = vadd.f32 %v66, %v69
    %s71 = scalar_lea.vmem [#allocation7], 1
    %72 = vst.msk [vmem:[%s71] ss:$4 sm:$0x3] %vm58, %v70
    %s73 = sld [smem:[#allocation2 + $0x6]]
    %v74 = vstv %s73
    %v75 = vmul.f32 %v74, %v39
    %s76 = sld [smem:[#allocation2 + $0x7]]
    %v77 = vstv %s76
    %v78 = vmul.f32 %v77, %v41
    %v79 = vadd.f32 %v75, %v78
    %s80 = sld [smem:[#allocation2 + $0x8]]
    %v81 = vstv %s80
    %v82 = vmul.f32 %v81, %v43
    %v83 = vadd.f32 %v79, %v82
    %s84 = scalar_lea.vmem [#allocation7], 2
    %85 = vst.msk [vmem:[%s84] ss:$4 sm:$0x3] %vm58, %v83
    // Predicated region
    $region18: #{tpu_custom_call.1} parent=1 // pred_check
      _
    $region19: #{tpu_custom_call.1} parent=1 // pred_check_branch
      %87 = sbr.rel (0) target = $region21
    $region20: #{tpu_custom_call.1} parent=1 // pred_region
      %89 = vsyncadd [#allocation4], 0
      %s91 = sshll.u32 [#allocation7], 4
      %s92 = int_to_ptr.vmem [resolvable:$true] %s91
      %s93 = sshll.u32 %s2, 4
      %s94 = int_to_ptr.hbm [resolvable:$true] %s93
      %96 = dma.vmem_to_hbm [thread:$0]  %s92, 128, %s94, [#allocation4]
    $region21: #{tpu_custom_call.1} parent=1 // pred_fallthru
      _
    // Predicated region
    $region22: #{tpu_custom_call.1} parent=1 // pred_check
      _
    $region23: #{tpu_custom_call.1} parent=1 // pred_check_branch
      %98 = sbr.rel (0) target = $region25
    $region24: #{tpu_custom_call.1} parent=1 // pred_region
      %100 = dma.done [#allocation4], 128
    $region25: #{tpu_custom_call.1} parent=1 // pred_fallthru
      _
    %101 = vsyncpa [#allocation3], 1
    %102 = vsyncpa [#allocation4], 1
    %103 = vsyncpa [#allocation5], 1

</llo_original>
